<compile_context>
chip_gen: v7x
topology: tpu7x:2x2x1
jax: 0.10.0
libtpu: 0.0.40
codegen_flags: <defaults>
</compile_context>

<pallas_src>
import functools
import math

import jax
import jax.numpy as jnp
from jax.experimental import pallas as pl
from jax.experimental.pallas import tpu as pltpu

BF16 = jnp.bfloat16


# ----------------------------------------------------------------------------
# Kernels
# ----------------------------------------------------------------------------
def project_kernel(h_ref, w_ref, out_ref):
    """out_tile = h_tile @ W  (tiny pre-projection, bf16 in, f32 acc, bf16 out)."""
    out_ref[...] = jnp.dot(
        h_ref[...], w_ref[...], preferred_element_type=jnp.float32
    ).astype(out_ref.dtype)


def gcn_aggregate_kernel(adj_ref, p_ref, *refs, apply_relu):
    """Accumulate out_tile = act( adj[i, :] @ p ) over the K grid axis.

    refs = (*out_refs, acc_ref).  acc_ref is an f32 VMEM scratch that persists
    across the trailing "arbitrary" K axis; outputs are written at the last K
    step (every out_ref gets the same value cast to its own dtype).
    """
    *out_refs, acc_ref = refs
    k = pl.program_id(1)

    @pl.when(k == 0)
    def _():
        acc_ref[...] = jnp.zeros_like(acc_ref)

    acc_ref[...] += jnp.dot(
        adj_ref[...], p_ref[...], preferred_element_type=jnp.float32
    )

    @pl.when(k == pl.num_programs(1) - 1)
    def _():
        out = acc_ref[...]
        if apply_relu:
            out = jnp.maximum(out, 0.0)
        for o in out_refs:
            o[...] = out.astype(o.dtype)


def inner_product_kernel(z_rows_ref, z_cols_ref, out_ref):
    """out_tile[i, j] = z_rows @ z_cols.T  (contract the feature dim)."""
    out_ref[...] = jax.lax.dot_general(
        z_rows_ref[...], z_cols_ref[...],
        dimension_numbers=(((1,), (1,)), ((), ())),
        preferred_element_type=jnp.float32,
    ).astype(out_ref.dtype)


# ----------------------------------------------------------------------------
# Helpers
# ----------------------------------------------------------------------------
def _block_bytes(shape, dtype):
    return math.prod(shape) * jnp.dtype(dtype).itemsize


def _compiler_params(semantics, blocks):
    """Explicit VMEM budget: 2x double-buffered pipelined blocks + headroom,
    capped at v7x's 64 MiB physical VMEM (v5e/v6e have 128 MiB)."""
    pipelined = sum(_block_bytes(s, d) for s, d in blocks)
    budget = int(2 * pipelined * 1.25) + (4 << 20)
    budget = max(8 << 20, min(budget, 64 << 20))
    return pltpu.CompilerParams(
        dimension_semantics=semantics, vmem_limit_bytes=budget
    )


def _project(h_b, w_b, tile_m):
    """p = h @ W  (N x H output, bf16)."""
    N, F = h_b.shape
    H = w_b.shape[1]
    return pl.pallas_call(
        project_kernel,
        out_shape=jax.ShapeDtypeStruct((N, H), BF16),
        grid=(N // tile_m,),
        in_specs=[
            pl.BlockSpec((tile_m, F), lambda i: (i, 0)),
            pl.BlockSpec((F, H), lambda i: (0, 0)),          # resident weight
        ],
        out_specs=pl.BlockSpec((tile_m, H), lambda i: (i, 0)),
        compiler_params=_compiler_params(
            ("parallel",),
            [((tile_m, F), BF16), ((F, H), BF16), ((tile_m, H), BF16)],
        ),
        cost_estimate=pl.CostEstimate(
            flops=2 * N * F * H,
            transcendentals=0,
            bytes_accessed=2 * (N * F + F * H + N * H),
        ),
    )(h_b, w_b)


def _aggregate(adj_b, p_b, out_dtypes, apply_relu, tile_m, tile_k):
    """outs = act( adj @ p ), one output per dtype in out_dtypes (tuple)."""
    N = adj_b.shape[0]
    H = p_b.shape[1]
    grid = (N // tile_m, N // tile_k)
    out_shape = tuple(jax.ShapeDtypeStruct((N, H), dt) for dt in out_dtypes)
    out_specs = tuple(
        pl.BlockSpec((tile_m, H), lambda i, k: (i, 0)) for _ in out_dtypes
    )
    out_bytes = sum(N * H * jnp.dtype(dt).itemsize for dt in out_dtypes)
    outs = pl.pallas_call(
        functools.partial(gcn_aggregate_kernel, apply_relu=apply_relu),
        out_shape=out_shape,
        grid=grid,
        in_specs=[
            pl.BlockSpec((tile_m, tile_k), lambda i, k: (i, k)),   # adj tile
            pl.BlockSpec((tile_k, H), lambda i, k: (k, 0)),        # projection tile
        ],
        out_specs=out_specs,
        scratch_shapes=[pltpu.VMEM((tile_m, H), jnp.float32)],
        compiler_params=_compiler_params(
            ("parallel", "arbitrary"),
            [((tile_m, tile_k), BF16), ((tile_k, H), BF16)]
            + [((tile_m, H), dt) for dt in out_dtypes]
            + [((tile_m, H), jnp.float32)],
        ),
        cost_estimate=pl.CostEstimate(
            flops=2 * N * N * H,
            transcendentals=0,
            bytes_accessed=2 * N * N + 2 * N * H * (N // tile_m) + out_bytes,
        ),
    )(adj_b, p_b)
    return outs


# ----------------------------------------------------------------------------
# Forward wrapper
# ----------------------------------------------------------------------------
def gcn_vae_forward(x, adj, w1, w2, *, tile_m=128, tile_k=128, tile_n=128,
                    recon_dtype=BF16):
    """x: [N, F], adj: [N, N] dense normalized adjacency (pass bf16 to avoid a
    per-call N^2 cast), w1: [F, H1], w2: [H1, H2].
    Returns (adj_recon [N, N] recon_dtype, z [N, H2] f32).

    Tile sizing: 128-aligned works on all chips; raise tile_m/tile_k/tile_n to
    256 on v6e/v7x (MXU is 2x256x256) VMEM permitting.
    """
    N, F = x.shape
    H1 = w1.shape[1]
    H2 = w2.shape[1]

    tile_m = min(tile_m, N)
    tile_k = min(tile_k, N)
    tile_n = min(tile_n, N)
    assert N % tile_m == 0 and N % tile_k == 0 and N % tile_n == 0, \
        "wrapper assumes N divisible by tile sizes (add tail handling otherwise)"

    # adj should already be bf16 (precompute once outside the forward); only the
    # tiny O(N*F) / O(F*H) operands are cast here.
    adj_b = adj if adj.dtype == BF16 else adj.astype(BF16)
    x_b = x.astype(BF16)
    w1_b = w1.astype(BF16)
    w2_b = w2.astype(BF16)

    # ---- gc1: hidden1 = relu( adj @ (x @ W1) ) --------------------------------
    p1 = _project(x_b, w1_b, tile_m)                                  # [N, H1] bf16
    (hidden1,) = _aggregate(adj_b, p1, (BF16,), True, tile_m, tile_k)  # [N, H1] bf16

    # ---- gc2: z = adj @ (hidden1 @ W2) ---------------------------------------
    p2 = _project(hidden1, w2_b, tile_m)                              # [N, H2] bf16
    z, z_b = _aggregate(adj_b, p2, (jnp.float32, BF16), False, tile_m, tile_k)

    # ---- InnerProductDecoder: adj_recon = z @ z.T (act = identity) ------------
    # Output emitted in bf16 (recon_dtype) — this stage is HBM-write-bound.
    adj_recon = pl.pallas_call(
        inner_product_kernel,
        out_shape=jax.ShapeDtypeStruct((N, N), recon_dtype),
        grid=(N // tile_m, N // tile_n),
        in_specs=[
            pl.BlockSpec((tile_m, H2), lambda i, j: (i, 0)),
            pl.BlockSpec((tile_n, H2), lambda i, j: (j, 0)),
        ],
        out_specs=pl.BlockSpec((tile_m, tile_n), lambda i, j: (i, j)),
        compiler_params=_compiler_params(
            ("parallel", "parallel"),
            [((tile_m, H2), BF16), ((tile_n, H2), BF16),
             ((tile_m, tile_n), recon_dtype)],
        ),
        cost_estimate=pl.CostEstimate(
            flops=2 * N * N * H2,
            transcendentals=0,
            bytes_accessed=2 * 2 * N * H2
            + N * N * jnp.dtype(recon_dtype).itemsize,
        ),
    )(z_b, z_b)

    return adj_recon, z


# ----------------------------------------------------------------------------
# Pure-JAX reference (same math & same bf16 rounding points as the kernels)
# ----------------------------------------------------------------------------
def reference_forward(x, adj, w1, w2):
    adj_b = adj.astype(BF16)

    p1 = jnp.dot(x.astype(BF16), w1.astype(BF16),
                 preferred_element_type=jnp.float32).astype(BF16)
    hidden1 = jnp.maximum(
        jnp.dot(adj_b, p1, preferred_element_type=jnp.float32), 0.0
    ).astype(BF16)

    p2 = jnp.dot(hidden1, w2.astype(BF16),
                 preferred_element_type=jnp.float32).astype(BF16)
    z = jnp.dot(adj_b, p2, preferred_element_type=jnp.float32)

    z_b = z.astype(BF16)
    adj_recon = jax.lax.dot_general(
        z_b, z_b, dimension_numbers=(((1,), (1,)), ((), ())),
        preferred_element_type=jnp.float32)
    return adj_recon, z


# ----------------------------------------------------------------------------
# Demo / self-test
# ----------------------------------------------------------------------------
if __name__ == "__main__":
    N, F_in, H1, H2 = 256, 64, 32, 16   # small graph: 256 nodes

    key = jax.random.PRNGKey(0)
    kx, ka, k1, k2 = jax.random.split(key, 4)

    x = jax.random.normal(kx, (N, F_in), jnp.float32)

    # Random symmetric adjacency with self-loops, symmetrically normalized.
    a = (jax.random.uniform(ka, (N, N)) < 0.05).astype(jnp.float32)
    a = jnp.maximum(a, a.T) + jnp.eye(N, dtype=jnp.float32)
    d_inv_sqrt = 1.0 / jnp.sqrt(a.sum(axis=1))
    adj = a * d_inv_sqrt[:, None] * d_inv_sqrt[None, :]
    adj_b16 = adj.astype(BF16)   # precompute bf16 adjacency once (not per forward)

    # Glorot-style weight init (GraphConvolution has no bias).
    w1 = jax.random.normal(k1, (F_in, H1), jnp.float32) * jnp.sqrt(2.0 / (F_in + H1))
    w2 = jax.random.normal(k2, (H1, H2), jnp.float32) * jnp.sqrt(2.0 / (H1 + H2))

    adj_recon, z = gcn_vae_forward(x, adj_b16, w1, w2,
                                   tile_m=128, tile_k=128, tile_n=128)
    adj_recon, z = jax.block_until_ready((adj_recon, z))

    ref_recon, ref_z = reference_forward(x, adj, w1, w2)

    assert adj_recon.shape == (N, N) and z.shape == (N, H2)
    assert z.dtype == jnp.float32
    assert jnp.allclose(z, ref_z, atol=2e-2, rtol=2e-2)
    assert jnp.allclose(adj_recon.astype(jnp.float32), ref_recon,
                        atol=5e-2, rtol=5e-2)

    print("KERNEL_OK")
</pallas_src>

<mosaic_0001>
module attributes {stable_mosaic.version = 11 : i64} {
  func.func @project_kernel(%arg0: i32, %arg1: memref<128x64xbf16, #tpu.memory_space<vmem>>, %arg2: memref<64x32xbf16, #tpu.memory_space<vmem>>, %arg3: memref<128x32xbf16, #tpu.memory_space<vmem>>) attributes {dimension_semantics = [#tpu.dimension_semantics<parallel>], iteration_bounds = array<i64: 2>, scalar_prefetch = 0 : i64, scratch_operands = 0 : i64, tpu.core_type = #tpu.core_type<tc>, window_params = [{transform_indices = @transform_0, window_bounds = array<i64: 128, 64>}, {pipeline_mode = #tpu.pipeline_mode<synchronous>, transform_indices = @transform_1, window_bounds = array<i64: 64, 32>}, {transform_indices = @transform_2, window_bounds = array<i64: 128, 32>}]} {
    %c0 = arith.constant 0 : index
    %c0_0 = arith.constant 0 : index
    %0 = vector.load %arg1[%c0, %c0_0] : memref<128x64xbf16, #tpu.memory_space<vmem>>, vector<128x64xbf16>
    %c0_1 = arith.constant 0 : index
    %c0_2 = arith.constant 0 : index
    %1 = vector.load %arg2[%c0_1, %c0_2] : memref<64x32xbf16, #tpu.memory_space<vmem>>, vector<64x32xbf16>
    %cst = arith.constant dense<0.000000e+00> : vector<128x32xf32>
    %2 = tpu.matmul %0, %1, %cst {dimension_numbers = #tpu.dot_dimension_numbers<[1], [0], [0], [1], [0, 0, 1, 1], [], []>} : vector<128x64xbf16>, vector<64x32xbf16>, vector<128x32xf32> -> vector<128x32xf32>
    %3 = arith.truncf %2 : vector<128x32xf32> to vector<128x32xbf16>
    %c0_3 = arith.constant 0 : index
    %c0_4 = arith.constant 0 : index
    %4 = vector.load %arg3[%c0_3, %c0_4] : memref<128x32xbf16, #tpu.memory_space<vmem>>, vector<128x32xbf16>
    tpu.vector_store %arg3[%c0_3, %c0_4], %3 {strides = array<i32>} : memref<128x32xbf16, #tpu.memory_space<vmem>>, vector<128x32xbf16>,
    return
  }
  func.func @transform_0(%arg0: i32) -> (i32, i32) {
    %c0_i32 = arith.constant 0 : i32
    %c0_i32_0 = arith.constant 0 : i32
    return %arg0, %c0_i32 : i32, i32
  }
  func.func @transform_1(%arg0: i32) -> (i32, i32) {
    %c0_i32 = arith.constant 0 : i32
    %c0_i32_0 = arith.constant 0 : i32
    %c0_i32_1 = arith.constant 0 : i32
    return %c0_i32, %c0_i32_0 : i32, i32
  }
  func.func @transform_2(%arg0: i32) -> (i32, i32) {
    %c0_i32 = arith.constant 0 : i32
    %c0_i32_0 = arith.constant 0 : i32
    return %arg0, %c0_i32 : i32, i32
  }
}

</mosaic_0001>

<llo_original>
// kernel: tpu_custom_call.1
$region0: #{tpu_custom_call.1}
  #allocation0 [shape = 'u32[]', space=smem, size = 0x4, offset = 0x4, fixed_abs, tag = 'smem constant byte address 0x4 - core index']
  #allocation1 [shape = 'u32[144,128]{1,0:T(1,128)}', space=vmem, size = 0x12000, scoped, tag = 'internal scratch']
  %s0 = inlined_call_operand.vmem [shape: bf16[256,64], index: 0, kind: input, shape index: {}]
  %s1 = inlined_call_operand.vmem [shape: bf16[64,32], index: 1, kind: input, shape index: {}]
  %s2 = inlined_call_operand.vmem [shape: bf16[256,32], index: 2, kind: output, shape index: {}]
  %s3 = sld [smem:[#allocation0]]
  $region41: #{tpu_custom_call.1} parent=0
    _
  %s5 = ssub.s32 1, %s3
  %s6 = scalar_select 0, %s5, %s3
  loop: start=0, step=1, limit=4
  $region2: #{tpu_custom_call.1} parent=0 // loop_pre_header
    _
  $region3: #{tpu_custom_call.1} parent=0 // loop_header
    %s8 = sphi 0, %s12
    %p9 = scmp.ge.s32.totalorder %s8, 4
    %s18 = sphi 0, %s20
    %s21 = sphi 0, %s18
    %s22 = sphi 0, %s21
    %s38 = sphi 0, %s22
    %s42 = sphi 0, %s42
    %s44 = sphi 0, %s42
    %s45 = sphi 0, %s44
    %s59 = sphi 0, %s45
    %s65 = sphi 0, %s67
    %s68 = sphi 0, %s65
    %s69 = sphi 0, %s68
    %s85 = sphi 0, %s69
  $region4: #{tpu_custom_call.1} parent=0 // loop_header_branch
    %11 = sbr.rel (%p9) target = $region8
  $region5: #{tpu_custom_call.1} parent=0 // loop_body
    %s13 = ssub.s32 %s8, 1
    %s14 = ssub.s32 %s8, 2
    %s15 = sadd.s32 %s8, 1
    %s16 = ssub.s32 %s8, %s15
    %p17 = scmp.eq.s32.totalorder %s16, 0
    %s19 = sadd.s32 %s18, 1
    %s20 = scalar_select %p17, %s18, %s19
    %p23 = pneg %p17
    %p24 = scmp.eq.s32.totalorder %s8, 1
    %p25 = por %p23, %p24
    %p26 = scmp.ne.s32.totalorder %s18, %s21
    %p27 = scmp.eq.s32.totalorder %s8, 0
    %p28 = por %p26, %p27
    %p29 = scmp.ne.s32.totalorder %s18, %s21
    %p30 = scmp.eq.s32.totalorder %s13, 1
    %p31 = por %p29, %p30
    %p32 = scmp.ne.s32.totalorder %s21, %s22
    %p33 = scmp.eq.s32.totalorder %s13, 0
    %p34 = por %p32, %p33
    %p35 = scmp.ne.s32.totalorder %s21, %s22
    %p36 = scmp.eq.s32.totalorder %s14, 1
    %p37 = por %p35, %p36
    %p39 = scmp.ne.s32.totalorder %s22, %s38
    %p40 = scmp.eq.s32.totalorder %s14, 0
    %p41 = por %p39, %p40
    %s43 = sadd.s32 %s42, 1
    %p46 = scmp.eq.s32.totalorder %s8, 1
    %p47 = scmp.ne.s32.totalorder %s42, %s44
    %p48 = scmp.eq.s32.totalorder %s8, 0
    %p49 = por %p47, %p48
    %p50 = scmp.ne.s32.totalorder %s42, %s44
    %p51 = scmp.eq.s32.totalorder %s13, 1
    %p52 = por %p50, %p51
    %p53 = scmp.ne.s32.totalorder %s44, %s45
    %p54 = scmp.eq.s32.totalorder %s13, 0
    %p55 = por %p53, %p54
    %p56 = scmp.ne.s32.totalorder %s44, %s45
    %p57 = scmp.eq.s32.totalorder %s14, 1
    %p58 = por %p56, %p57
    %p60 = scmp.ne.s32.totalorder %s45, %s59
    %p61 = scmp.eq.s32.totalorder %s14, 0
    %p62 = por %p60, %p61
    %s63 = ssub.s32 %s8, %s15
    %p64 = scmp.eq.s32.totalorder %s63, 0
    %s66 = sadd.s32 %s65, 1
    %s67 = scalar_select %p64, %s65, %s66
    %p70 = pneg %p64
    %p71 = scmp.eq.s32.totalorder %s8, 1
    %p72 = por %p70, %p71
    %p73 = scmp.ne.s32.totalorder %s65, %s68
    %p74 = scmp.eq.s32.totalorder %s8, 0
    %p75 = por %p73, %p74
    %p76 = scmp.ne.s32.totalorder %s65, %s68
    %p77 = scmp.eq.s32.totalorder %s13, 1
    %p78 = por %p76, %p77
    %p79 = scmp.ne.s32.totalorder %s68, %s69
    %p80 = scmp.eq.s32.totalorder %s13, 0
    %p81 = por %p79, %p80
    %p82 = scmp.ne.s32.totalorder %s68, %s69
    %p83 = scmp.eq.s32.totalorder %s14, 1
    %p84 = por %p82, %p83
    %p86 = scmp.ne.s32.totalorder %s69, %s85
    %p87 = scmp.eq.s32.totalorder %s14, 0
    %p88 = por %p86, %p87
    %p89 = scmp.le.s32.totalorder 1, %s8
    %p90 = scmp.lt.s32.totalorder %s8, 3
    %p91 = pnand %p89, %p90
    %p92 = pneg %p91
    // Predicated region
    $region9: #{tpu_custom_call.1} parent=5 // pred_check
      _
    $region10: #{tpu_custom_call.1} parent=5 // pred_check_branch
      %94 = sbr.rel (%p91) target = $region12
    $region11: #{tpu_custom_call.1} parent=5 // pred_region
      %s95 = ssub.s32 %s8, 1
      // Predicated region
      $region13: #{tpu_custom_call.1} parent=11 // pred_check
        %p96 = pneg %p55
      $region14: #{tpu_custom_call.1} parent=11 // pred_check_branch
        %98 = sbr.rel (%p96) target = $region16
      $region15: #{tpu_custom_call.1} parent=11 // pred_region
        _
      $region16: #{tpu_custom_call.1} parent=11 // pred_fallthru
        _
    $region12: #{tpu_custom_call.1} parent=5 // pred_fallthru
      _
    %p99 = scmp.lt.s32.totalorder %s8, 2
    // Predicated region
    $region17: #{tpu_custom_call.1} parent=5 // pred_check
      %p100 = pneg %p99
    $region18: #{tpu_custom_call.1} parent=5 // pred_check_branch
      %102 = sbr.rel (%p100) target = $region20
    $region19: #{tpu_custom_call.1} parent=5 // pred_region
      // Predicated region
      $region21: #{tpu_custom_call.1} parent=19 // pred_check
        %p103 = pneg %p28
      $region22: #{tpu_custom_call.1} parent=19 // pred_check_branch
        %105 = sbr.rel (%p103) target = $region24
      $region23: #{tpu_custom_call.1} parent=19 // pred_region
        %s106 = smul.u32 16, %s8
        %p107 = scmp.lt.s32.totalorder %s106, 31
        %s108 = scalar_select %p107, %s106, 31
        %s109 = smul.addr %s108, 4
        %s110 = scalar_lea.vmem %s0, %s109
        %s111 = smul.u32 16, %s8
      $region24: #{tpu_custom_call.1} parent=19 // pred_fallthru
        _
    $region20: #{tpu_custom_call.1} parent=5 // pred_fallthru
      _
    %p112 = scmp.le.s32.totalorder 1, %s8
    %p113 = scmp.lt.s32.totalorder %s8, 3
    %p114 = pnand %p112, %p113
    %p115 = pneg %p114
    // Predicated region
    $region25: #{tpu_custom_call.1} parent=5 // pred_check
      _
    $region26: #{tpu_custom_call.1} parent=5 // pred_check_branch
      %117 = sbr.rel (%p114) target = $region28
    $region27: #{tpu_custom_call.1} parent=5 // pred_region
      %s118 = ssub.s32 %s8, 1
      %s119 = smul.u32 16, %s13
      %p120 = scmp.lt.s32.totalorder %s119, 31
      %s121 = scalar_select %p120, %s119, 31
      %s122 = smul.addr %s121, 4
      %s123 = scalar_lea.vmem %s0, %s122
      %p124 = pneg %p34
      %p125 = pneg %p31
      %p126 = pneg %p55
      %p127 = pneg %p52
      %p128 = pneg %p81
      %p129 = pneg %p78
      %s130 = smul.u32 16, %s13
      %p131 = scmp.lt.s32.totalorder %s130, 31
      %s132 = scalar_select %p131, %s130, 31
      %s133 = smul.addr %s132, 4
      %s134 = scalar_lea.vmem %s2, %s133
      %s135 = smul.u32 16, %s13
      %p136 = scmp.lt.s32.totalorder %s135, 31
      %s137 = scalar_select %p136, %s135, 31
      %s138 = smul.addr %s137, 4
      %s139 = scalar_lea.vmem %s0, %s138
      %s140 = smul.u32 16, %s13
      %s141 = smul.u32 16, %s13
      %p142 = scmp.lt.s32.totalorder %s141, 31
      %s143 = scalar_select %p142, %s141, 31
      %s144 = smul.addr %s143, 4
      %s145 = scalar_lea.vmem %s2, %s144
      %s146 = smul.u32 16, %s13
      %v148 = vld [vmem:[%s139] sm:$0xf]
      %v149 = vld [vmem:[%s139 + $0x4] sm:$0xf]
      %v150 = vld [vmem:[%s139 + $0x8] sm:$0xf]
      %v151 = vld [vmem:[%s139 + $0xc] sm:$0xf]
      %v152 = vld [vmem:[%s139 + $0x10] sm:$0xf]
      %v153 = vld [vmem:[%s139 + $0x14] sm:$0xf]
      %v154 = vld [vmem:[%s139 + $0x18] sm:$0xf]
      %v155 = vld [vmem:[%s139 + $0x1c] sm:$0xf]
      %v156 = vld [vmem:[%s139 + $0x20] sm:$0xf]
      %v157 = vld [vmem:[%s139 + $0x24] sm:$0xf]
      %v158 = vld [vmem:[%s139 + $0x28] sm:$0xf]
      %v159 = vld [vmem:[%s139 + $0x2c] sm:$0xf]
      %v160 = vld [vmem:[%s139 + $0x30] sm:$0xf]
      %v161 = vld [vmem:[%s139 + $0x34] sm:$0xf]
      %v162 = vld [vmem:[%s139 + $0x38] sm:$0xf]
      %v163 = vld [vmem:[%s139 + $0x3c] sm:$0xf]
      %v164 = vld [vmem:[%s1] sm:$0xf]
      %v165 = vld [vmem:[%s1 + $0x4] sm:$0xf]
      %v166 = vld [vmem:[%s1 + $0x8] sm:$0xf]
      %v167 = vld [vmem:[%s1 + $0xc] sm:$0xf]
      %v168 = vld [vmem:[%s1 + $0x10] sm:$0xf]
      %v169 = vld [vmem:[%s1 + $0x14] sm:$0xf]
      %v170 = vld [vmem:[%s1 + $0x18] sm:$0xf]
      %v171 = vld [vmem:[%s1 + $0x1c] sm:$0xf]
      %v188 = vunpack.c.l.b16 %v148
      %v189 = vunpack.c.l.b16 %v149
      %v190 = vunpack.c.l.b16 %v150
      %v191 = vunpack.c.l.b16 %v151
      %v192 = vunpack.c.l.b16 %v152
      %v193 = vunpack.c.l.b16 %v153
      %v194 = vunpack.c.l.b16 %v154
      %v195 = vunpack.c.l.b16 %v155
      %v196 = vunpack.c.l.b16 %v156
      %v197 = vunpack.c.l.b16 %v157
      %v198 = vunpack.c.l.b16 %v158
      %v199 = vunpack.c.l.b16 %v159
      %v200 = vunpack.c.l.b16 %v160
      %v201 = vunpack.c.l.b16 %v161
      %v202 = vunpack.c.l.b16 %v162
      %v203 = vunpack.c.l.b16 %v163
      %v204 = vpack.c.b16 %v189, %v188
      %v205 = vpack.c.b16 %v191, %v190
      %v206 = vpack.c.b16 %v193, %v192
      %v207 = vpack.c.b16 %v195, %v194
      %v208 = vpack.c.b16 %v197, %v196
      %v209 = vpack.c.b16 %v199, %v198
      %v210 = vpack.c.b16 %v201, %v200
      %v211 = vpack.c.b16 %v203, %v202
      %v220 = vunpack.c.l.b16 %v164
      %v221 = vunpack.c.l.b16 %v165
      %v222 = vunpack.c.l.b16 %v166
      %v223 = vunpack.c.l.b16 %v167
      %v224 = vunpack.c.l.b16 %v168
      %v225 = vunpack.c.l.b16 %v169
      %v226 = vunpack.c.l.b16 %v170
      %v227 = vunpack.c.l.b16 %v171
      %v228 = vpack.c.b16 %v221, %v220
      %v229 = vpack.c.b16 %v223, %v222
      %v230 = vpack.c.b16 %v225, %v224
      %v231 = vpack.c.b16 %v227, %v226
      %vm236 = vcmask 523264
      %v238 = vsel %vm236, %v204, 0
      %v241 = vsel %vm236, %v205, 0
      %v244 = vsel %vm236, %v206, 0
      %v247 = vsel %vm236, %v207, 0
      %v250 = vsel %vm236, %v208, 0
      %v253 = vsel %vm236, %v209, 0
      %v256 = vsel %vm236, %v210, 0
      %v259 = vsel %vm236, %v211, 0
      %261 = vmatprep.subr.bf16.mxu0 0
      %262 = vmatpush1.bf16.msra.mxu0 %v228
      %263 = vmatprep.subr.bf16.mxu0 0
      %264 = vmatpush1.bf16.msra.mxu0 %v229
      %265 = vmatprep.subr.bf16.mxu0 0
      %266 = vmatpush1.bf16.msra.mxu0 %v230
      %267 = vmatprep.subr.bf16.mxu0 0
      %268 = vmatpush1.bf16.msra.mxu0 %v231
      %269 = vmatprep.subr.bf16.mxu0 0
      %270 = vmatpush1.bf16.msra.mxu0 0
      %271 = vmatprep.subr.bf16.mxu0 0
      %272 = vmatpush1.bf16.msra.mxu0 0
      %273 = vmatprep.subr.bf16.mxu0 0
      %274 = vmatpush1.bf16.msra.mxu0 0
      %275 = vmatprep.subr.bf16.mxu0 0
      %276 = vmatpush1.bf16.msra.mxu0 0
      %277 = vmatprep.subr.bf16.mxu0 0
      %278 = vmatpush1.bf16.msra.mxu0 0
      %279 = vmatprep.subr.bf16.mxu0 0
      %280 = vmatpush1.bf16.msra.mxu0 0
      %281 = vmatprep.subr.bf16.mxu0 0
      %282 = vmatpush1.bf16.msra.mxu0 0
      %283 = vmatprep.subr.bf16.mxu0 0
      %284 = vmatpush1.bf16.msra.mxu0 0
      %285 = vmatprep.subr.bf16.mxu0 0
      %286 = vmatpush1.bf16.msra.mxu0 0
      %287 = vmatprep.subr.bf16.mxu0 0
      %288 = vmatpush1.bf16.msra.mxu0 0
      %289 = vmatprep.subr.bf16.mxu0 0
      %290 = vmatpush1.bf16.msra.mxu0 0
      %291 = vmatprep.subr.bf16.mxu0 0
      %292 = vmatpush1.bf16.msra.mxu0 0
      %293 = vmatprep.mubr.bf16.mxu0 0
      %294 = vmatmul.mubr.bf16.gmra.mrb[0].mxu0 %v238
      %v295 = vpop.f32.mrb[0].mxu0
      %v296 = vadd.f32 0.0, %v295
      %v297 = vpop.f32.mrb[0].mxu0
      %v298 = vpop.f32.mrb[0].mxu0
      %v299 = vadd.f32 0.0, %v298
      %v300 = vpop.f32.mrb[0].mxu0
      %301 = vmatprep.mubr.bf16.mxu0 0
      %302 = vmatmul.mubr.bf16.gmra.mrb[0].mxu0 %v241
      %v303 = vpop.f32.mrb[0].mxu0
      %v304 = vadd.f32 0.0, %v303
      %v305 = vpop.f32.mrb[0].mxu0
      %v306 = vpop.f32.mrb[0].mxu0
      %v307 = vadd.f32 0.0, %v306
      %v308 = vpop.f32.mrb[0].mxu0
      %309 = vmatprep.mubr.bf16.mxu0 0
      %310 = vmatmul.mubr.bf16.gmra.mrb[0].mxu0 %v244
      %v311 = vpop.f32.mrb[0].mxu0
      %v312 = vadd.f32 0.0, %v311
      %v313 = vpop.f32.mrb[0].mxu0
      %v314 = vpop.f32.mrb[0].mxu0
      %v315 = vadd.f32 0.0, %v314
      %v316 = vpop.f32.mrb[0].mxu0
      %317 = vmatprep.mubr.bf16.mxu0 0
      %318 = vmatmul.mubr.bf16.gmra.mrb[0].mxu0 %v247
      %v319 = vpop.f32.mrb[0].mxu0
      %v320 = vadd.f32 0.0, %v319
      %v321 = vpop.f32.mrb[0].mxu0
      %v322 = vpop.f32.mrb[0].mxu0
      %v323 = vadd.f32 0.0, %v322
      %v324 = vpop.f32.mrb[0].mxu0
      %325 = vmatprep.mubr.bf16.mxu0 0
      %326 = vmatmul.mubr.bf16.gmra.mrb[0].mxu0 %v250
      %v327 = vpop.f32.mrb[0].mxu0
      %v328 = vadd.f32 0.0, %v327
      %v329 = vpop.f32.mrb[0].mxu0
      %v330 = vpop.f32.mrb[0].mxu0
      %v331 = vadd.f32 0.0, %v330
      %v332 = vpop.f32.mrb[0].mxu0
      %333 = vmatprep.mubr.bf16.mxu0 0
      %334 = vmatmul.mubr.bf16.gmra.mrb[0].mxu0 %v253
      %v335 = vpop.f32.mrb[0].mxu0
      %v336 = vadd.f32 0.0, %v335
      %v337 = vpop.f32.mrb[0].mxu0
      %v338 = vpop.f32.mrb[0].mxu0
      %v339 = vadd.f32 0.0, %v338
      %v340 = vpop.f32.mrb[0].mxu0
      %341 = vmatprep.mubr.bf16.mxu0 0
      %342 = vmatmul.mubr.bf16.gmra.mrb[0].mxu0 %v256
      %v343 = vpop.f32.mrb[0].mxu0
      %v344 = vadd.f32 0.0, %v343
      %v345 = vpop.f32.mrb[0].mxu0
      %v346 = vpop.f32.mrb[0].mxu0
      %v347 = vadd.f32 0.0, %v346
      %v348 = vpop.f32.mrb[0].mxu0
      %349 = vmatprep.mubr.bf16.mxu0 0
      %350 = vmatmul.mubr.bf16.gmra.mrb[0].mxu0 %v259
      %v351 = vpop.f32.mrb[0].mxu0
      %v352 = vadd.f32 0.0, %v351
      %v353 = vpop.f32.mrb[0].mxu0
      %v354 = vpop.f32.mrb[0].mxu0
      %v355 = vadd.f32 0.0, %v354
      %v356 = vpop.f32.mrb[0].mxu0
      %357 = vdwg.mxu0
      %v358 = vpack.c.bf16 %v299, %v296
      %v359 = vpack.c.bf16 %v307, %v304
      %v360 = vpack.c.bf16 %v315, %v312
      %v361 = vpack.c.bf16 %v323, %v320
      %v362 = vpack.c.bf16 %v331, %v328
      %v363 = vpack.c.bf16 %v339, %v336
      %v364 = vpack.c.bf16 %v347, %v344
      %v365 = vpack.c.bf16 %v355, %v352
      %v374 = vunpack.c.l.b16 %v358
      %v375 = vunpack.c.h.b16 %v358
      %v376 = vunpack.c.l.b16 %v359
      %v377 = vunpack.c.h.b16 %v359
      %v378 = vunpack.c.l.b16 %v360
      %v379 = vunpack.c.h.b16 %v360
      %v380 = vunpack.c.l.b16 %v361
      %v381 = vunpack.c.h.b16 %v361
      %v382 = vunpack.c.l.b16 %v362
      %v383 = vunpack.c.h.b16 %v362
      %v384 = vunpack.c.l.b16 %v363
      %v385 = vunpack.c.h.b16 %v363
      %v386 = vunpack.c.l.b16 %v364
      %v387 = vunpack.c.h.b16 %v364
      %v388 = vunpack.c.l.b16 %v365
      %v389 = vunpack.c.h.b16 %v365
      %v390 = vpack.c.b16 %v374, %v374
      %v391 = vpack.c.b16 %v375, %v375
      %v392 = vpack.c.b16 %v376, %v376
      %v393 = vpack.c.b16 %v377, %v377
      %v394 = vpack.c.b16 %v378, %v378
      %v395 = vpack.c.b16 %v379, %v379
      %v396 = vpack.c.b16 %v380, %v380
      %v397 = vpack.c.b16 %v381, %v381
      %v398 = vpack.c.b16 %v382, %v382
      %v399 = vpack.c.b16 %v383, %v383
      %v400 = vpack.c.b16 %v384, %v384
      %v401 = vpack.c.b16 %v385, %v385
      %v402 = vpack.c.b16 %v386, %v386
      %v403 = vpack.c.b16 %v387, %v387
      %v404 = vpack.c.b16 %v388, %v388
      %v405 = vpack.c.b16 %v389, %v389
      %vm422 = vcmask 257024
      %423 = vst.msk [vmem:[%s145] sm:$0xf] %vm422, %v390
      %424 = vst.msk [vmem:[%s145 + $0x4] sm:$0xf] %vm422, %v391
      %425 = vst.msk [vmem:[%s145 + $0x8] sm:$0xf] %vm422, %v392
      %426 = vst.msk [vmem:[%s145 + $0xc] sm:$0xf] %vm422, %v393
      %427 = vst.msk [vmem:[%s145 + $0x10] sm:$0xf] %vm422, %v394
      %428 = vst.msk [vmem:[%s145 + $0x14] sm:$0xf] %vm422, %v395
      %429 = vst.msk [vmem:[%s145 + $0x18] sm:$0xf] %vm422, %v396
      %430 = vst.msk [vmem:[%s145 + $0x1c] sm:$0xf] %vm422, %v397
      %431 = vst.msk [vmem:[%s145 + $0x20] sm:$0xf] %vm422, %v398
      %432 = vst.msk [vmem:[%s145 + $0x24] sm:$0xf] %vm422, %v399
      %433 = vst.msk [vmem:[%s145 + $0x28] sm:$0xf] %vm422, %v400
      %434 = vst.msk [vmem:[%s145 + $0x2c] sm:$0xf] %vm422, %v401
      %435 = vst.msk [vmem:[%s145 + $0x30] sm:$0xf] %vm422, %v402
      %436 = vst.msk [vmem:[%s145 + $0x34] sm:$0xf] %vm422, %v403
      %437 = vst.msk [vmem:[%s145 + $0x38] sm:$0xf] %vm422, %v404
      %438 = vst.msk [vmem:[%s145 + $0x3c] sm:$0xf] %vm422, %v405
      %s439 = smul.u32 16, %s13
      %p440 = scmp.lt.s32.totalorder %s439, 31
      %s441 = scalar_select %p440, %s439, 31
      %s442 = smul.addr %s441, 4
      %s443 = scalar_lea.vmem %s2, %s442
      // Predicated region
      $region29: #{tpu_custom_call.1} parent=27 // pred_check
        %p444 = pneg %p78
      $region30: #{tpu_custom_call.1} parent=27 // pred_check_branch
        %446 = sbr.rel (%p444) target = $region32
      $region31: #{tpu_custom_call.1} parent=27 // pred_region
        %s447 = smul.u32 16, %s13
      $region32: #{tpu_custom_call.1} parent=27 // pred_fallthru
        _
    $region28: #{tpu_custom_call.1} parent=5 // pred_fallthru
      _
    %p448 = scmp.le.s32.totalorder 2, %s8
    // Predicated region
    $region33: #{tpu_custom_call.1} parent=5 // pred_check
      %p449 = pneg %p448
    $region34: #{tpu_custom_call.1} parent=5 // pred_check_branch
      %451 = sbr.rel (%p449) target = $region36
    $region35: #{tpu_custom_call.1} parent=5 // pred_region
      %s452 = ssub.s32 %s8, 2
      // Predicated region
      $region37: #{tpu_custom_call.1} parent=35 // pred_check
        %p453 = pneg %p84
      $region38: #{tpu_custom_call.1} parent=35 // pred_check_branch
        %455 = sbr.rel (%p453) target = $region40
      $region39: #{tpu_custom_call.1} parent=35 // pred_region
        %s456 = smul.u32 16, %s14
        %p457 = scmp.lt.s32.totalorder %s456, 31
        %s458 = scalar_select %p457, %s456, 31
        %s459 = smul.addr %s458, 4
        %s460 = scalar_lea.vmem %s2, %s459
      $region40: #{tpu_custom_call.1} parent=35 // pred_fallthru
        _
    $region36: #{tpu_custom_call.1} parent=5 // pred_fallthru
      _
  $region6: #{tpu_custom_call.1} parent=0 // loop_footer
    %s12 = sadd.s32 1, %s8
  $region7: #{tpu_custom_call.1} parent=0 // loop_footer_branch
    %7 = sbr.rel target = $region3
  $region8: #{tpu_custom_call.1} parent=0 // loop_exit
    _

</llo_original>
